<compile_context>
chip_gen: v7x
topology: tpu7x:2x2x1
jax: 0.10.0
libtpu: 0.0.40
codegen_flags: <defaults>
</compile_context>

<pallas_src>
import functools
import math

import jax
import jax.numpy as jnp
from jax.experimental import pallas as pl
from jax.experimental.pallas import tpu as pltpu

EPS = 1e-6


# ----------------------------- generation-aware sizing -----------------------------

def _vmem_capacity_bytes():
    try:
        return int(pltpu.get_tpu_info().vmem_capacity_bytes)
    except Exception:
        return 64 * 1024 * 1024  # conservative (v7x-sized) fallback


_VMEM_CAP_BYTES = _vmem_capacity_bytes()
_VMEM_LIMIT_BYTES = min((_VMEM_CAP_BYTES * 3) // 4, 100 * 1024 * 1024)
_ROW_TILE_TARGET = 512 if _VMEM_CAP_BYTES >= (96 << 20) else 256


def _row_tile(n, target=None):
    """Largest sublane-granular tile <= target that divides n (else full dim)."""
    target = _ROW_TILE_TARGET if target is None else target
    for t in (512, 256, 128, 64, 32, 16, 8):
        if t <= target and n % t == 0:
            return t
    return n  # full dim -> always a legal block


def _lane_tile(n, target=2048):
    """Lane-dim tile: multiple of 128 dividing n, else the full dim."""
    for t in (2048, 1024, 512, 256, 128):
        if t <= target and n % t == 0:
            return t
    return n


def _compiler_params(semantics):
    return pltpu.CompilerParams(
        dimension_semantics=semantics,
        vmem_limit_bytes=_VMEM_LIMIT_BYTES,
    )


def _ln_f32(x, a, b):
    """LayerNorm in f32: a * (x - mean) / (std + eps) + b, std unbiased (ddof=1)."""
    d = x.shape[-1]
    mean = jnp.mean(x, axis=-1, keepdims=True)
    var = jnp.sum((x - mean) ** 2, axis=-1, keepdims=True) / (d - 1)
    inv = pl.reciprocal(jnp.sqrt(var) + EPS, approx=False)  # exact: feeds everything downstream
    return a * (x - mean) * inv + b


# ----------------------------- Pallas kernels -----------------------------

def layernorm_kernel(x_ref, a_ref, b_ref, o_ref):
    x = x_ref[...].astype(jnp.float32)
    o_ref[...] = _ln_f32(x, a_ref[...], b_ref[...]).astype(o_ref.dtype)


def ln_qkv_kernel(x_ref, a_ref, b_ref, wq_ref, wk_ref, wv_ref,
                  q_ref, k_ref, v_ref, *, compute_dtype):
    # Fused pre-norm LN + Q/K/V projections; three direct outputs (no packed buffer, no split).
    x = x_ref[...].astype(jnp.float32)
    xn = _ln_f32(x, a_ref[...], b_ref[...]).astype(compute_dtype)
    q_ref[...] = jnp.dot(xn, wq_ref[...], preferred_element_type=jnp.float32).astype(q_ref.dtype)
    k_ref[...] = jnp.dot(xn, wk_ref[...], preferred_element_type=jnp.float32).astype(k_ref.dtype)
    v_ref[...] = jnp.dot(xn, wv_ref[...], preferred_element_type=jnp.float32).astype(v_ref.dtype)


def ln_matmul_kernel(x_ref, a_ref, b_ref, w_ref, o_ref, *, compute_dtype):
    x = x_ref[...].astype(jnp.float32)
    xn = _ln_f32(x, a_ref[...], b_ref[...]).astype(compute_dtype)
    o_ref[...] = jnp.dot(xn, w_ref[...], preferred_element_type=jnp.float32).astype(o_ref.dtype)


def kv_kernel(x_ref, wk_ref, wv_ref, k_ref, v_ref, *, compute_dtype):
    # Cross-attention K/V projection of the encoder output (not LayerNormed).
    x = x_ref[...].astype(compute_dtype)
    k_ref[...] = jnp.dot(x, wk_ref[...], preferred_element_type=jnp.float32).astype(k_ref.dtype)
    v_ref[...] = jnp.dot(x, wv_ref[...], preferred_element_type=jnp.float32).astype(v_ref.dtype)


def ln_ffn_residual_kernel(x_ref, a_ref, b_ref, w1_ref, b1_ref, w2_ref, b2_ref,
                           fa_ref, fb_ref, o_ref, xn_scr, acc_scr,
                           *, compute_dtype, final_ln):
    # Grid: (row tiles, d_ff tiles). LN(x) computed once per row tile into VMEM scratch;
    # the d_ff axis is a reduction into an f32 accumulator initialized with x + b2 (residual).
    kf = pl.program_id(1)

    @pl.when(kf == 0)
    def _():
        x = x_ref[...].astype(jnp.float32)
        xn_scr[...] = _ln_f32(x, a_ref[...], b_ref[...]).astype(xn_scr.dtype)
        acc_scr[...] = x + b2_ref[...]            # residual + 2nd-linear bias

    h = jnp.dot(xn_scr[...], w1_ref[...], preferred_element_type=jnp.float32) + b1_ref[...]
    h = jnp.maximum(h, 0.0)
    acc_scr[...] += jnp.dot(h.astype(compute_dtype), w2_ref[...],
                            preferred_element_type=jnp.float32)

    @pl.when(kf == pl.num_programs(1) - 1)
    def _():
        y = acc_scr[...]
        if final_ln:                              # fused final Decoder.norm on the last layer
            y = _ln_f32(y, fa_ref[...], fb_ref[...])
        o_ref[...] = y.astype(o_ref.dtype)


def attn_kernel(x_ref, q_ref, k_ref, v_ref, m_ref, wo_ref, o_ref,
                m_scr, l_scr, acc_scr, *, n_heads, scale, compute_dtype):
    # Grid: (batch, q-row tiles, kv tiles). Flash-style online softmax over the kv axis
    # with running per-head max / sum and a (tq, D) f32 context accumulator.
    ki = pl.program_id(2)

    @pl.when(ki == 0)
    def _():
        m_scr[...] = jnp.full(m_scr.shape, -1e30, m_scr.dtype)
        l_scr[...] = jnp.zeros(l_scr.shape, l_scr.dtype)
        acc_scr[...] = jnp.zeros(acc_scr.shape, acc_scr.dtype)

    # mask bias hoisted out of the head loop (one compare/select on the VPU)
    bias = jnp.where(m_ref[...] == 0.0, -1e9, 0.0)          # (1|tq, tk) f32
    dk = q_ref.shape[-1] // n_heads

    for h in range(n_heads):                                # static unroll over heads
        sl = slice(h * dk, (h + 1) * dk)
        qh = q_ref[:, sl]                                   # per-head ref slices
        kh = k_ref[:, sl]
        vh = v_ref[:, sl]
        s = jax.lax.dot_general(qh, kh, (((1,), (1,)), ((), ())),
                                preferred_element_type=jnp.float32) * scale + bias
        m_prev = m_scr[:, h:h + 1]
        m_new = jnp.maximum(m_prev, jnp.max(s, axis=-1, keepdims=True))
        alpha = jnp.exp(m_prev - m_new)
        p = jnp.exp(s - m_new)
        l_scr[:, h:h + 1] = alpha * l_scr[:, h:h + 1] + jnp.sum(p, axis=-1, keepdims=True)
        pv = jnp.dot(p.astype(compute_dtype), vh, preferred_element_type=jnp.float32)
        acc_scr[:, sl] = alpha * acc_scr[:, sl] + pv
        m_scr[:, h:h + 1] = m_new

    @pl.when(ki == pl.num_programs(2) - 1)
    def _():
        out = x_ref[...].astype(jnp.float32)                # residual
        for h in range(n_heads):                            # per-head Wo-row accumulation
            sl = slice(h * dk, (h + 1) * dk)
            inv_l = pl.reciprocal(l_scr[:, h:h + 1], approx=True)   # EUP
            ctx = (acc_scr[:, sl] * inv_l).astype(compute_dtype)
            out = out + jnp.dot(ctx, wo_ref[sl, :], preferred_element_type=jnp.float32)
        o_ref[...] = out.astype(o_ref.dtype)


# ----------------------------- Pallas wrappers -----------------------------

def pallas_layernorm(x2d, a, b):
    n, d = x2d.shape
    tr = _row_tile(n)
    return pl.pallas_call(
        layernorm_kernel,
        grid=(pl.cdiv(n, tr),),
        in_specs=[pl.BlockSpec((tr, d), lambda i: (i, 0)),
                  pl.BlockSpec((1, d), lambda i: (0, 0)),
                  pl.BlockSpec((1, d), lambda i: (0, 0))],
        out_specs=pl.BlockSpec((tr, d), lambda i: (i, 0)),
        out_shape=jax.ShapeDtypeStruct((n, d), x2d.dtype),
        compiler_params=_compiler_params(("parallel",)),
    )(x2d, a, b)


def pallas_ln_qkv(x2d, a, b, wq, wk, wv, compute_dtype):
    n, d = x2d.shape
    tr = _row_tile(n)
    row = lambda: pl.BlockSpec((tr, d), lambda i: (i, 0))
    vec = lambda: pl.BlockSpec((1, d), lambda i: (0, 0))
    wsp = lambda: pl.BlockSpec((d, d), lambda i: (0, 0))
    outsd = jax.ShapeDtypeStruct((n, d), compute_dtype)
    return pl.pallas_call(
        functools.partial(ln_qkv_kernel, compute_dtype=compute_dtype),
        grid=(pl.cdiv(n, tr),),
        in_specs=[row(), vec(), vec(), wsp(), wsp(), wsp()],
        out_specs=(row(), row(), row()),
        out_shape=(outsd, outsd, outsd),
        compiler_params=_compiler_params(("parallel",)),
    )(x2d, a, b, wq, wk, wv)


def pallas_ln_matmul(x2d, a, b, w, compute_dtype):
    n, d = x2d.shape
    dout = w.shape[1]
    tr = _row_tile(n)
    return pl.pallas_call(
        functools.partial(ln_matmul_kernel, compute_dtype=compute_dtype),
        grid=(pl.cdiv(n, tr),),
        in_specs=[pl.BlockSpec((tr, d), lambda i: (i, 0)),
                  pl.BlockSpec((1, d), lambda i: (0, 0)),
                  pl.BlockSpec((1, d), lambda i: (0, 0)),
                  pl.BlockSpec((d, dout), lambda i: (0, 0))],
        out_specs=pl.BlockSpec((tr, dout), lambda i: (i, 0)),
        out_shape=jax.ShapeDtypeStruct((n, dout), compute_dtype),
        compiler_params=_compiler_params(("parallel",)),
    )(x2d, a, b, w)


def pallas_kv(x2d, wk, wv, compute_dtype):
    n, d = x2d.shape
    tr = _row_tile(n)
    row = lambda: pl.BlockSpec((tr, d), lambda i: (i, 0))
    wsp = lambda: pl.BlockSpec((d, d), lambda i: (0, 0))
    outsd = jax.ShapeDtypeStruct((n, d), compute_dtype)
    return pl.pallas_call(
        functools.partial(kv_kernel, compute_dtype=compute_dtype),
        grid=(pl.cdiv(n, tr),),
        in_specs=[row(), wsp(), wsp()],
        out_specs=(row(), row()),
        out_shape=(outsd, outsd),
        compiler_params=_compiler_params(("parallel",)),
    )(x2d, wk, wv)


def pallas_ln_ffn_residual(x2d, a, b, w1, b1, w2, b2, fa, fb, compute_dtype, final_ln):
    n, d = x2d.shape
    dff = w1.shape[1]
    tr = _row_tile(n)
    tf = _lane_tile(dff)
    grid = (pl.cdiv(n, tr), pl.cdiv(dff, tf))
    return pl.pallas_call(
        functools.partial(ln_ffn_residual_kernel, compute_dtype=compute_dtype,
                          final_ln=final_ln),
        grid=grid,
        in_specs=[
            pl.BlockSpec((tr, d), lambda i, k: (i, 0)),      # x (resident across d_ff tiles)
            pl.BlockSpec((1, d), lambda i, k: (0, 0)),       # ln alpha
            pl.BlockSpec((1, d), lambda i, k: (0, 0)),       # ln bias
            pl.BlockSpec((d, tf), lambda i, k: (0, k)),      # w1 column tile
            pl.BlockSpec((1, tf), lambda i, k: (0, k)),      # b1 column tile
            pl.BlockSpec((tf, d), lambda i, k: (k, 0)),      # w2 row tile
            pl.BlockSpec((1, d), lambda i, k: (0, 0)),       # b2
            pl.BlockSpec((1, d), lambda i, k: (0, 0)),       # final LN alpha
            pl.BlockSpec((1, d), lambda i, k: (0, 0)),       # final LN bias
        ],
        out_specs=pl.BlockSpec((tr, d), lambda i, k: (i, 0)),
        out_shape=jax.ShapeDtypeStruct((n, d), x2d.dtype),
        scratch_shapes=[pltpu.VMEM((tr, d), compute_dtype),  # LN(x), reused across d_ff tiles
                        pltpu.VMEM((tr, d), jnp.float32)],   # f32 accumulator
        compiler_params=_compiler_params(("parallel", "arbitrary")),
    )(x2d, a, b, w1, b1, w2, b2, fa, fb)


def pallas_attention(x, q, k, v, mask3, wo, n_heads, compute_dtype):
    # x, q: (B, Sq, D); k, v: (B, Sk, D); mask3: (B, {1|Sq}, Sk) f32 (never head-broadcast)
    # Output: (B, Sq, D) = x + MultiHeadAttention(q, k, v) @ wo   (residual fused)
    B, Sq, D = x.shape
    Sk = k.shape[1]
    Mq = mask3.shape[1]
    dk = D // n_heads
    tq = _row_tile(Sq)
    tk = _lane_tile(Sk, target=1024)
    grid = (B, pl.cdiv(Sq, tq), pl.cdiv(Sk, tk))
    sq3 = lambda r, c: (pl.Squeezed(), r, c)
    if Mq == 1:
        m_spec = pl.BlockSpec(sq3(1, tk), lambda bi, qi, ki: (bi, 0, ki))
    else:
        m_spec = pl.BlockSpec(sq3(tq, tk), lambda bi, qi, ki: (bi, qi, ki))
    return pl.pallas_call(
        functools.partial(attn_kernel, n_heads=n_heads, scale=1.0 / math.sqrt(dk),
                          compute_dtype=compute_dtype),
        grid=grid,
        in_specs=[
            pl.BlockSpec(sq3(tq, D), lambda bi, qi, ki: (bi, qi, 0)),   # residual x
            pl.BlockSpec(sq3(tq, D), lambda bi, qi, ki: (bi, qi, 0)),   # q rows
            pl.BlockSpec(sq3(tk, D), lambda bi, qi, ki: (bi, ki, 0)),   # k tile
            pl.BlockSpec(sq3(tk, D), lambda bi, qi, ki: (bi, ki, 0)),   # v tile
            m_spec,                                                     # mask
            pl.BlockSpec((D, D), lambda bi, qi, ki: (0, 0)),            # wo resident
        ],
        out_specs=pl.BlockSpec(sq3(tq, D), lambda bi, qi, ki: (bi, qi, 0)),
        out_shape=jax.ShapeDtypeStruct((B, Sq, D), x.dtype),
        scratch_shapes=[pltpu.VMEM((tq, n_heads), jnp.float32),   # running max per head
                        pltpu.VMEM((tq, n_heads), jnp.float32),   # running sum per head
                        pltpu.VMEM((tq, D), jnp.float32)],        # running context accumulator
        compiler_params=_compiler_params(("parallel", "parallel", "arbitrary")),
    )(x, q, k, v, mask3, wo)


# ----------------------------- Model (glue in plain JAX) -----------------------------

def _prep_mask(mask, batch):
    """Collapse the singleton head dim; keep (B, {1|Sq}, Sk) f32 — never broadcast over heads."""
    m = jnp.broadcast_to(mask, (batch,) + tuple(mask.shape[1:]))
    return m[:, 0].astype(jnp.float32)


_WEIGHT_KEYS = ("sa_wq", "sa_wk", "sa_wv", "sa_wo",
                "ca_wq", "ca_wk", "ca_wv", "ca_wo", "ff_w1", "ff_w2")


def cast_weights(params, dtype):
    """Pre-cast MXU weight matrices in HBM (halves weight traffic / resident-weight VMEM);
    LayerNorm params and biases stay f32 (they enter f32 accumulators)."""
    layers = []
    for lp in params["layers"]:
        lp = dict(lp)
        for key in _WEIGHT_KEYS:
            lp[key] = lp[key].astype(dtype)
        layers.append(lp)
    out = dict(params)
    out["layers"] = layers
    return out


def decoder_forward(params, tgt_seq, encoder_output, src_mask, tgt_mask, n_heads):
    x = tgt_seq
    B, S, D = x.shape
    Se = encoder_output.shape[1]
    enc2d = encoder_output.reshape(B * Se, D)
    tgt_m = _prep_mask(tgt_mask, B)     # (B, S, S)
    src_m = _prep_mask(src_mask, B)     # (B, 1, Se)

    layers = params["layers"]
    # MXU operand dtype = stored weight dtype (f32 or bf16); accumulation is always f32.
    compute_dtype = layers[0]["sa_wq"].dtype if layers else jnp.float32
    n_layers = len(layers)

    for li, lp in enumerate(layers):
        is_last = li == n_layers - 1

        # ---- residual 0: pre-norm self-attention (LN + Q/K/V fused, no packed intermediates) ----
        x2d = x.reshape(B * S, D)
        q, k, v = pallas_ln_qkv(x2d, lp["ln0_a"], lp["ln0_b"],
                                lp["sa_wq"], lp["sa_wk"], lp["sa_wv"], compute_dtype)
        x = pallas_attention(x, q.reshape(B, S, D), k.reshape(B, S, D), v.reshape(B, S, D),
                             tgt_m, lp["sa_wo"], n_heads, compute_dtype)

        # ---- residual 1: pre-norm cross-attention; K/V from encoder output (not normed) ----
        x2d = x.reshape(B * S, D)
        q = pallas_ln_matmul(x2d, lp["ln1_a"], lp["ln1_b"], lp["ca_wq"],
                             compute_dtype).reshape(B, S, D)
        k, v = pallas_kv(enc2d, lp["ca_wk"], lp["ca_wv"], compute_dtype)
        x = pallas_attention(x, q, k.reshape(B, Se, D), v.reshape(B, Se, D),
                             src_m, lp["ca_wo"], n_heads, compute_dtype)

        # ---- residual 2: pre-norm FFN (d_ff K-grid) + residual (+ fused final Decoder.norm) ----
        x2d = x.reshape(B * S, D)
        x = pallas_ln_ffn_residual(x2d, lp["ln2_a"], lp["ln2_b"],
                                   lp["ff_w1"], lp["ff_b1"], lp["ff_w2"], lp["ff_b2"],
                                   params["ln_a"], params["ln_b"],
                                   compute_dtype, final_ln=is_last).reshape(B, S, D)

    if not layers:  # degenerate: zero layers -> the Decoder is just the final LayerNorm
        x = pallas_layernorm(x.reshape(B * S, D), params["ln_a"], params["ln_b"]).reshape(B, S, D)
    return x


# ----------------------------- Pure-JAX reference (for verification) -----------------------------

def ref_layernorm(x, a, b):
    mean = jnp.mean(x, axis=-1, keepdims=True)
    var = jnp.sum((x - mean) ** 2, axis=-1, keepdims=True) / (x.shape[-1] - 1)
    return a.reshape(-1) * (x - mean) / (jnp.sqrt(var) + EPS) + b.reshape(-1)


def ref_mha(x_q, x_kv, mask, wq, wk, wv, wo, n_heads):
    B, Sq, D = x_q.shape
    Sk = x_kv.shape[1]
    dk = D // n_heads
    q = (x_q @ wq).reshape(B, Sq, n_heads, dk).transpose(0, 2, 1, 3)
    k = (x_kv @ wk).reshape(B, Sk, n_heads, dk).transpose(0, 2, 1, 3)
    v = (x_kv @ wv).reshape(B, Sk, n_heads, dk).transpose(0, 2, 1, 3)
    s = jnp.einsum("bhqd,bhkd->bhqk", q, k) / math.sqrt(dk)
    s = jnp.where(jnp.broadcast_to(mask, s.shape) == 0, -1e9, s)
    p = jax.nn.softmax(s, axis=-1)
    o = jnp.einsum("bhqk,bhkd->bhqd", p, v).transpose(0, 2, 1, 3).reshape(B, Sq, D)
    return o @ wo


def ref_decoder(params, tgt, enc, src_mask, tgt_mask, n_heads):
    x = tgt
    for lp in params["layers"]:
        xn = ref_layernorm(x, lp["ln0_a"], lp["ln0_b"])
        x = x + ref_mha(xn, xn, tgt_mask, lp["sa_wq"], lp["sa_wk"], lp["sa_wv"], lp["sa_wo"], n_heads)
        xn = ref_layernorm(x, lp["ln1_a"], lp["ln1_b"])
        x = x + ref_mha(xn, enc, src_mask, lp["ca_wq"], lp["ca_wk"], lp["ca_wv"], lp["ca_wo"], n_heads)
        xn = ref_layernorm(x, lp["ln2_a"], lp["ln2_b"])
        h = jnp.maximum(xn @ lp["ff_w1"] + lp["ff_b1"].reshape(-1), 0.0)
        x = x + (h @ lp["ff_w2"] + lp["ff_b2"].reshape(-1))
    return ref_layernorm(x, params["ln_a"], params["ln_b"])


# ----------------------------- Parameter init -----------------------------

def init_params(key, d_model, d_ff, n_layers):
    # Weights stored as (in, out), i.e. transposed PyTorch nn.Linear weight; y = x @ W (+ b).
    def nrm(k, shape):
        return 0.02 * jax.random.normal(k, shape, jnp.float32)

    layers = []
    for _ in range(n_layers):
        key, *ks = jax.random.split(key, 13)
        layers.append(dict(
            ln0_a=jnp.ones((1, d_model), jnp.float32), ln0_b=jnp.zeros((1, d_model), jnp.float32),
            ln1_a=jnp.ones((1, d_model), jnp.float32), ln1_b=jnp.zeros((1, d_model), jnp.float32),
            ln2_a=jnp.ones((1, d_model), jnp.float32), ln2_b=jnp.zeros((1, d_model), jnp.float32),
            sa_wq=nrm(ks[0], (d_model, d_model)), sa_wk=nrm(ks[1], (d_model, d_model)),
            sa_wv=nrm(ks[2], (d_model, d_model)), sa_wo=nrm(ks[3], (d_model, d_model)),
            ca_wq=nrm(ks[4], (d_model, d_model)), ca_wk=nrm(ks[5], (d_model, d_model)),
            ca_wv=nrm(ks[6], (d_model, d_model)), ca_wo=nrm(ks[7], (d_model, d_model)),
            ff_w1=nrm(ks[8], (d_model, d_ff)), ff_b1=nrm(ks[9], (1, d_ff)),
            ff_w2=nrm(ks[10], (d_ff, d_model)), ff_b2=nrm(ks[11], (1, d_model)),
        ))
    return dict(
        layers=layers,
        ln_a=jnp.ones((1, d_model), jnp.float32),
        ln_b=jnp.zeros((1, d_model), jnp.float32),
    )


# ----------------------------- main -----------------------------

if __name__ == "__main__":
    B, S_TGT, S_SRC, D_MODEL, N_HEADS, D_FF, N_LAYERS = 2, 8, 8, 32, 4, 64, 2

    key = jax.random.PRNGKey(0)
    k_p, k_tgt, k_enc = jax.random.split(key, 3)

    params = init_params(k_p, D_MODEL, D_FF, N_LAYERS)
    tgt_seq = jax.random.normal(k_tgt, (B, S_TGT, D_MODEL), jnp.float32)
    encoder_output = jax.random.normal(k_enc, (B, S_SRC, D_MODEL), jnp.float32)

    # src_mask: (B, 1, 1, S_src) all ones; tgt_mask: (B, 1, S_tgt, S_tgt) causal
    src_mask = jnp.ones((B, 1, 1, S_SRC), jnp.float32)
    causal = jnp.tril(jnp.ones((S_TGT, S_TGT), jnp.float32))
    tgt_mask = jnp.broadcast_to(causal, (B, 1, S_TGT, S_TGT))

    ref = ref_decoder(params, tgt_seq, encoder_output, src_mask, tgt_mask, N_HEADS)

    # f32 weights / f32 MXU operands: tight check against the pure-JAX reference.
    out = decoder_forward(params, tgt_seq, encoder_output, src_mask, tgt_mask, N_HEADS)
    out = jax.block_until_ready(out)
    assert out.shape == (B, S_TGT, D_MODEL)
    assert jnp.allclose(out, ref, rtol=2e-3, atol=2e-3), "Pallas f32 output mismatch vs JAX reference"

    # bf16 weights in HBM (f32 accumulation, f32 LN/softmax statistics): looser tolerance.
    params_bf16 = cast_weights(params, jnp.bfloat16)
    out_bf16 = decoder_forward(params_bf16, tgt_seq, encoder_output, src_mask, tgt_mask, N_HEADS)
    out_bf16 = jax.block_until_ready(out_bf16)
    assert out_bf16.shape == (B, S_TGT, D_MODEL)
    assert jnp.allclose(out_bf16, ref, rtol=1e-1, atol=1e-1), "Pallas bf16 output mismatch vs JAX reference"

    print("KERNEL_OK")
</pallas_src>

<mosaic_0001>
module attributes {stable_mosaic.version = 11 : i64} {
  func.func @ln_qkv_kernel(%arg0: i32, %arg1: memref<16x32xf32, #tpu.memory_space<vmem>>, %arg2: memref<1x32xf32, #tpu.memory_space<vmem>>, %arg3: memref<1x32xf32, #tpu.memory_space<vmem>>, %arg4: memref<32x32xf32, #tpu.memory_space<vmem>>, %arg5: memref<32x32xf32, #tpu.memory_space<vmem>>, %arg6: memref<32x32xf32, #tpu.memory_space<vmem>>, %arg7: memref<16x32xf32, #tpu.memory_space<vmem>>, %arg8: memref<16x32xf32, #tpu.memory_space<vmem>>, %arg9: memref<16x32xf32, #tpu.memory_space<vmem>>) attributes {dimension_semantics = [#tpu.dimension_semantics<parallel>], iteration_bounds = array<i64: 1>, scalar_prefetch = 0 : i64, scratch_operands = 0 : i64, tpu.core_type = #tpu.core_type<tc>, window_params = [{transform_indices = @transform_0, window_bounds = array<i64: 16, 32>}, {pipeline_mode = #tpu.pipeline_mode<synchronous>, transform_indices = @transform_1, window_bounds = array<i64: 1, 32>}, {pipeline_mode = #tpu.pipeline_mode<synchronous>, transform_indices = @transform_2, window_bounds = array<i64: 1, 32>}, {pipeline_mode = #tpu.pipeline_mode<synchronous>, transform_indices = @transform_3, window_bounds = array<i64: 32, 32>}, {pipeline_mode = #tpu.pipeline_mode<synchronous>, transform_indices = @transform_4, window_bounds = array<i64: 32, 32>}, {pipeline_mode = #tpu.pipeline_mode<synchronous>, transform_indices = @transform_5, window_bounds = array<i64: 32, 32>}, {transform_indices = @transform_6, window_bounds = array<i64: 16, 32>}, {transform_indices = @transform_7, window_bounds = array<i64: 16, 32>}, {transform_indices = @transform_8, window_bounds = array<i64: 16, 32>}]} {
    %c0 = arith.constant 0 : index
    %c0_0 = arith.constant 0 : index
    %0 = vector.load %arg1[%c0, %c0_0] : memref<16x32xf32, #tpu.memory_space<vmem>>, vector<16x32xf32>
    %c0_1 = arith.constant 0 : index
    %c0_2 = arith.constant 0 : index
    %1 = vector.load %arg2[%c0_1, %c0_2] : memref<1x32xf32, #tpu.memory_space<vmem>>, vector<1x32xf32>
    %c0_3 = arith.constant 0 : index
    %c0_4 = arith.constant 0 : index
    %2 = vector.load %arg3[%c0_3, %c0_4] : memref<1x32xf32, #tpu.memory_space<vmem>>, vector<1x32xf32>
    %cst = arith.constant dense<0.000000e+00> : vector<16xf32>
    %3 = vector.multi_reduction <add>, %0, %cst [1] : vector<16x32xf32> to vector<16xf32>
    %4 = vector.shape_cast %3 : vector<16xf32> to vector<16x1xf32>
    %cst_5 = arith.constant 3.200000e+01 : f32
    %5 = vector.broadcast %cst_5 : f32 to vector<16x1xf32>
    %6 = arith.divf %4, %5 : vector<16x1xf32>
    %7 = vector.broadcast %6 : vector<16x1xf32> to vector<16x32xf32>
    %8 = arith.subf %0, %7 : vector<16x32xf32>
    %9 = arith.mulf %8, %8 : vector<16x32xf32>
    %cst_6 = arith.constant dense<0.000000e+00> : vector<16xf32>
    %10 = vector.multi_reduction <add>, %9, %cst_6 [1] : vector<16x32xf32> to vector<16xf32>
    %11 = vector.shape_cast %10 : vector<16xf32> to vector<16x1xf32>
    %cst_7 = arith.constant 3.100000e+01 : f32
    %12 = vector.broadcast %cst_7 : f32 to vector<16x1xf32>
    %13 = arith.divf %11, %12 : vector<16x1xf32>
    %14 = math.sqrt %13 : vector<16x1xf32>
    %cst_8 = arith.constant 9.99999997E-7 : f32
    %15 = vector.broadcast %cst_8 : f32 to vector<16x1xf32>
    %16 = arith.addf %14, %15 : vector<16x1xf32>
    %17 = tpu.reciprocal %16 : vector<16x1xf32> -> vector<16x1xf32>
    %18 = vector.broadcast %6 : vector<16x1xf32> to vector<16x32xf32>
    %19 = arith.subf %0, %18 : vector<16x32xf32>
    %20 = vector.broadcast %1 : vector<1x32xf32> to vector<16x32xf32>
    %21 = arith.mulf %20, %19 : vector<16x32xf32>
    %22 = vector.broadcast %17 : vector<16x1xf32> to vector<16x32xf32>
    %23 = arith.mulf %21, %22 : vector<16x32xf32>
    %24 = vector.broadcast %2 : vector<1x32xf32> to vector<16x32xf32>
    %25 = arith.addf %23, %24 : vector<16x32xf32>
    %c0_9 = arith.constant 0 : index
    %c0_10 = arith.constant 0 : index
    %26 = vector.load %arg4[%c0_9, %c0_10] : memref<32x32xf32, #tpu.memory_space<vmem>>, vector<32x32xf32>
    %cst_11 = arith.constant dense<0.000000e+00> : vector<16x32xf32>
    %27 = tpu.matmul %25, %26, %cst_11 {dimension_numbers = #tpu.dot_dimension_numbers<[1], [0], [0], [1], [0, 0, 1, 1], [], []>} : vector<16x32xf32>, vector<32x32xf32>, vector<16x32xf32> -> vector<16x32xf32>
    %c0_12 = arith.constant 0 : index
    %c0_13 = arith.constant 0 : index
    %28 = vector.load %arg7[%c0_12, %c0_13] : memref<16x32xf32, #tpu.memory_space<vmem>>, vector<16x32xf32>
    tpu.vector_store %arg7[%c0_12, %c0_13], %27 {strides = array<i32>} : memref<16x32xf32, #tpu.memory_space<vmem>>, vector<16x32xf32>,
    %c0_14 = arith.constant 0 : index
    %c0_15 = arith.constant 0 : index
    %29 = vector.load %arg5[%c0_14, %c0_15] : memref<32x32xf32, #tpu.memory_space<vmem>>, vector<32x32xf32>
    %cst_16 = arith.constant dense<0.000000e+00> : vector<16x32xf32>
    %30 = tpu.matmul %25, %29, %cst_16 {dimension_numbers = #tpu.dot_dimension_numbers<[1], [0], [0], [1], [0, 0, 1, 1], [], []>} : vector<16x32xf32>, vector<32x32xf32>, vector<16x32xf32> -> vector<16x32xf32>
    %c0_17 = arith.constant 0 : index
    %c0_18 = arith.constant 0 : index
    %31 = vector.load %arg8[%c0_17, %c0_18] : memref<16x32xf32, #tpu.memory_space<vmem>>, vector<16x32xf32>
    tpu.vector_store %arg8[%c0_17, %c0_18], %30 {strides = array<i32>} : memref<16x32xf32, #tpu.memory_space<vmem>>, vector<16x32xf32>,
    %c0_19 = arith.constant 0 : index
    %c0_20 = arith.constant 0 : index
    %32 = vector.load %arg6[%c0_19, %c0_20] : memref<32x32xf32, #tpu.memory_space<vmem>>, vector<32x32xf32>
    %cst_21 = arith.constant dense<0.000000e+00> : vector<16x32xf32>
    %33 = tpu.matmul %25, %32, %cst_21 {dimension_numbers = #tpu.dot_dimension_numbers<[1], [0], [0], [1], [0, 0, 1, 1], [], []>} : vector<16x32xf32>, vector<32x32xf32>, vector<16x32xf32> -> vector<16x32xf32>
    %c0_22 = arith.constant 0 : index
    %c0_23 = arith.constant 0 : index
    %34 = vector.load %arg9[%c0_22, %c0_23] : memref<16x32xf32, #tpu.memory_space<vmem>>, vector<16x32xf32>
    tpu.vector_store %arg9[%c0_22, %c0_23], %33 {strides = array<i32>} : memref<16x32xf32, #tpu.memory_space<vmem>>, vector<16x32xf32>,
    return
  }
  func.func @transform_0(%arg0: i32) -> (i32, i32) {
    %c0_i32 = arith.constant 0 : i32
    %c0_i32_0 = arith.constant 0 : i32
    return %arg0, %c0_i32 : i32, i32
  }
  func.func @transform_1(%arg0: i32) -> (i32, i32) {
    %c0_i32 = arith.constant 0 : i32
    %c0_i32_0 = arith.constant 0 : i32
    %c0_i32_1 = arith.constant 0 : i32
    return %c0_i32, %c0_i32_0 : i32, i32
  }
  func.func @transform_2(%arg0: i32) -> (i32, i32) {
    %c0_i32 = arith.constant 0 : i32
    %c0_i32_0 = arith.constant 0 : i32
    %c0_i32_1 = arith.constant 0 : i32
    return %c0_i32, %c0_i32_0 : i32, i32
  }
  func.func @transform_3(%arg0: i32) -> (i32, i32) {
    %c0_i32 = arith.constant 0 : i32
    %c0_i32_0 = arith.constant 0 : i32
    %c0_i32_1 = arith.constant 0 : i32
    return %c0_i32, %c0_i32_0 : i32, i32
  }
  func.func @transform_4(%arg0: i32) -> (i32, i32) {
    %c0_i32 = arith.constant 0 : i32
    %c0_i32_0 = arith.constant 0 : i32
    %c0_i32_1 = arith.constant 0 : i32
    return %c0_i32, %c0_i32_0 : i32, i32
  }
  func.func @transform_5(%arg0: i32) -> (i32, i32) {
    %c0_i32 = arith.constant 0 : i32
    %c0_i32_0 = arith.constant 0 : i32
    %c0_i32_1 = arith.constant 0 : i32
    return %c0_i32, %c0_i32_0 : i32, i32
  }
  func.func @transform_6(%arg0: i32) -> (i32, i32) {
    %c0_i32 = arith.constant 0 : i32
    %c0_i32_0 = arith.constant 0 : i32
    return %arg0, %c0_i32 : i32, i32
  }
  func.func @transform_7(%arg0: i32) -> (i32, i32) {
    %c0_i32 = arith.constant 0 : i32
    %c0_i32_0 = arith.constant 0 : i32
    return %arg0, %c0_i32 : i32, i32
  }
  func.func @transform_8(%arg0: i32) -> (i32, i32) {
    %c0_i32 = arith.constant 0 : i32
    %c0_i32_0 = arith.constant 0 : i32
    return %arg0, %c0_i32 : i32, i32
  }
}

</mosaic_0001>

<llo_original>
// kernel: tpu_custom_call.1
$region0: #{tpu_custom_call.1}
  #allocation0 [shape = 'u32[]', space=smem, size = 0x4, offset = 0x4, fixed_abs, tag = 'smem constant byte address 0x4 - core index']
  #allocation1 [shape = 'u32[144,128]{1,0:T(1,128)}', space=vmem, size = 0x12000, scoped, tag = 'internal scratch']
  %s0 = inlined_call_operand.hbm [shape: f32[16,32], index: 0, kind: input, shape index: {}]
  %s1 = inlined_call_operand.vmem [shape: f32[1,32], index: 1, kind: input, shape index: {}]
  %s2 = inlined_call_operand.vmem [shape: f32[1,32], index: 2, kind: input, shape index: {}]
  %s3 = inlined_call_operand.hbm [shape: f32[32,32], index: 3, kind: input, shape index: {}]
  %s4 = inlined_call_operand.hbm [shape: f32[32,32], index: 4, kind: input, shape index: {}]
  %s5 = inlined_call_operand.hbm [shape: f32[32,32], index: 5, kind: input, shape index: {}]
  %s6 = inlined_call_operand.hbm [shape: f32[16,32], index: 6, kind: output, shape index: {0}]
  %s7 = inlined_call_operand.hbm [shape: f32[16,32], index: 7, kind: output, shape index: {1}]
  %s8 = inlined_call_operand.hbm [shape: f32[16,32], index: 8, kind: output, shape index: {2}]
  %9 = xla_tuple %s6, %s7, %s8
  %s10 = sld [smem:[#allocation0]]
  $region66: #{tpu_custom_call.1} parent=0
    _
  %s12 = ssub.s32 1, %s10
  %s13 = scalar_select 0, %s12, %s10
  $region1: #{tpu_custom_call.1} parent=0
    #allocation2 [shape = 'u8[8192]{0}', space=vmem, size = 0x2000, scoped, tag = 'input window, operand 0, single buffered']
    #allocation3 [shape = 's32[1]{0}', space=sflag, size = 0x4, scoped, tag = 'scoped memory for tpu_custom_call.1']
    #allocation4 [shape = 's32[1]{0}', space=sflag, size = 0x4, scoped, tag = 'scoped memory for tpu_custom_call.1']
    #allocation5 [shape = 'u8[16384]{0}', space=vmem, size = 0x4000, scoped, tag = 'input window, operand 3, single buffered']
    #allocation6 [shape = 's32[1]{0}', space=sflag, size = 0x4, scoped, tag = 'scoped memory for tpu_custom_call.1']
    #allocation7 [shape = 'u8[16384]{0}', space=vmem, size = 0x4000, scoped, tag = 'input window, operand 4, single buffered']
    #allocation8 [shape = 'u8[16384]{0}', space=vmem, size = 0x4000, scoped, tag = 'input window, operand 5, single buffered']
    #allocation9 [shape = 's32[1]{0}', space=sflag, size = 0x4, scoped, tag = 'scoped memory for tpu_custom_call.1']
    #allocation10 [shape = 'u8[8192]{0}', space=vmem, size = 0x2000, scoped, tag = 'output window, operand 0, single buffered']
    #allocation11 [shape = 'u8[8192]{0}', space=vmem, size = 0x2000, scoped, tag = 'output window, operand 1, single buffered']
    #allocation12 [shape = 's32[1]{0}', space=sflag, size = 0x4, scoped, tag = 'scoped memory for tpu_custom_call.1']
    #allocation13 [shape = 'u8[8192]{0}', space=vmem, size = 0x2000, scoped, tag = 'output window, operand 2, single buffered']
    %14 = vsyncpa [#allocation3], 0
    %15 = vsyncpa [#allocation6], 0
    %16 = vsyncpa [#allocation9], 0
    %17 = vsyncpa [#allocation4], 0
    %18 = vsyncpa [#allocation12], 0
    // Predicated region
    $region2: #{tpu_custom_call.1} parent=1 // pred_check
      _
    $region3: #{tpu_custom_call.1} parent=1 // pred_check_branch
      %20 = sbr.rel (0) target = $region5
    $region4: #{tpu_custom_call.1} parent=1 // pred_region
      %s22 = ssub.s32 256, 256
      %23 = vsyncadd [#allocation3], %s22
      %s24 = sshll.u32 [#allocation2], 4
      %s25 = int_to_ptr.vmem [resolvable:$true] %s24
      %30 = dma.hbm_to_vmem [thread:$0]  %s0, 256, %s25, [#allocation3], 128, 128, 8
    $region5: #{tpu_custom_call.1} parent=1 // pred_fallthru
      _
    // Predicated region
    $region6: #{tpu_custom_call.1} parent=1 // pred_check
      _
    $region7: #{tpu_custom_call.1} parent=1 // pred_check_branch
      %32 = sbr.rel (0) target = $region9
    $region8: #{tpu_custom_call.1} parent=1 // pred_region
      _
    $region9: #{tpu_custom_call.1} parent=1 // pred_fallthru
      _
    // Predicated region
    $region10: #{tpu_custom_call.1} parent=1 // pred_check
      _
    $region11: #{tpu_custom_call.1} parent=1 // pred_check_branch
      %34 = sbr.rel (0) target = $region13
    $region12: #{tpu_custom_call.1} parent=1 // pred_region
      _
    $region13: #{tpu_custom_call.1} parent=1 // pred_fallthru
      _
    // Predicated region
    $region14: #{tpu_custom_call.1} parent=1 // pred_check
      _
    $region15: #{tpu_custom_call.1} parent=1 // pred_check_branch
      %36 = sbr.rel (0) target = $region17
    $region16: #{tpu_custom_call.1} parent=1 // pred_region
      %s38 = ssub.s32 512, 512
      %39 = vsyncadd [#allocation6], %s38
      %s40 = sshll.u32 [#allocation5], 4
      %s41 = int_to_ptr.vmem [resolvable:$true] %s40
      %46 = dma.hbm_to_vmem [thread:$0]  %s3, 512, %s41, [#allocation6], 128, 128, 8
    $region17: #{tpu_custom_call.1} parent=1 // pred_fallthru
      _
    // Predicated region
    $region18: #{tpu_custom_call.1} parent=1 // pred_check
      _
    $region19: #{tpu_custom_call.1} parent=1 // pred_check_branch
      %48 = sbr.rel (0) target = $region21
    $region20: #{tpu_custom_call.1} parent=1 // pred_region
      %s50 = ssub.s32 512, 512
      %51 = vsyncadd [#allocation6], %s50
      %s52 = sshll.u32 [#allocation7], 4
      %s53 = int_to_ptr.vmem [resolvable:$true] %s52
      %58 = dma.hbm_to_vmem [thread:$0]  %s4, 512, %s53, [#allocation6], 128, 128, 8
    $region21: #{tpu_custom_call.1} parent=1 // pred_fallthru
      _
    // Predicated region
    $region22: #{tpu_custom_call.1} parent=1 // pred_check
      _
    $region23: #{tpu_custom_call.1} parent=1 // pred_check_branch
      %60 = sbr.rel (0) target = $region25
    $region24: #{tpu_custom_call.1} parent=1 // pred_region
      %s62 = ssub.s32 512, 512
      %63 = vsyncadd [#allocation9], %s62
      %s64 = sshll.u32 [#allocation8], 4
      %s65 = int_to_ptr.vmem [resolvable:$true] %s64
      %70 = dma.hbm_to_vmem [thread:$0]  %s5, 512, %s65, [#allocation9], 128, 128, 8
    $region25: #{tpu_custom_call.1} parent=1 // pred_fallthru
      _
    // Predicated region
    $region26: #{tpu_custom_call.1} parent=1 // pred_check
      _
    $region27: #{tpu_custom_call.1} parent=1 // pred_check_branch
      %72 = sbr.rel (0) target = $region29
    $region28: #{tpu_custom_call.1} parent=1 // pred_region
      %73 = dma.done [#allocation3], 256
    $region29: #{tpu_custom_call.1} parent=1 // pred_fallthru
      _
    // Predicated region
    $region30: #{tpu_custom_call.1} parent=1 // pred_check
      _
    $region31: #{tpu_custom_call.1} parent=1 // pred_check_branch
      %75 = sbr.rel (0) target = $region33
    $region32: #{tpu_custom_call.1} parent=1 // pred_region
      %76 = dma.done [#allocation6], 512
    $region33: #{tpu_custom_call.1} parent=1 // pred_fallthru
      _
    // Predicated region
    $region34: #{tpu_custom_call.1} parent=1 // pred_check
      _
    $region35: #{tpu_custom_call.1} parent=1 // pred_check_branch
      %78 = sbr.rel (0) target = $region37
    $region36: #{tpu_custom_call.1} parent=1 // pred_region
      %79 = dma.done [#allocation6], 512
    $region37: #{tpu_custom_call.1} parent=1 // pred_fallthru
      _
    // Predicated region
    $region38: #{tpu_custom_call.1} parent=1 // pred_check
      _
    $region39: #{tpu_custom_call.1} parent=1 // pred_check_branch
      %81 = sbr.rel (0) target = $region41
    $region40: #{tpu_custom_call.1} parent=1 // pred_region
      %82 = dma.done [#allocation9], 512
    $region41: #{tpu_custom_call.1} parent=1 // pred_fallthru
      _
    %v83 = vld [vmem:[#allocation2] sm:$0xff]
    %v84 = vld [vmem:[#allocation2 + $0x8] sm:$0xff]
    %v85 = vld [vmem:[%s1] sm:$0x1]
    %v86 = vld [vmem:[%s2] sm:$0x1]
    %vm87 = vcmask 261120
    %v88 = vsel %vm87, %v83, 0.0
    %89 = vadd.xlane.f32.xlu0 %v88
    %v90 = vpop.xlane.xlu0 %89
    %v91 = vsel %vm87, %v84, 0.0
    %92 = vadd.xlane.f32.xlu0 %v91
    %v93 = vpop.xlane.xlu0 %92
    %v94 = vrcp.pop 32.0
    %v95 = vmul.f32 %v90, %v94
    %v96 = vmul.f32 %v93, %v94
    %v97 = vsub.f32 %v83, %v95
    %v98 = vsub.f32 %v84, %v96
    %v99 = vmul.f32 %v97, %v97
    %v100 = vmul.f32 %v98, %v98
    %v101 = vsel %vm87, %v99, 0.0
    %102 = vadd.xlane.f32.xlu0 %v101
    %v103 = vpop.xlane.xlu0 %102
    %v104 = vsel %vm87, %v100, 0.0
    %105 = vadd.xlane.f32.xlu0 %v104
    %v106 = vpop.xlane.xlu0 %105
    %v107 = vrcp.pop 31.0
    %v108 = vmul.f32 %v103, %v107
    %v109 = vmul.f32 %v106, %v107
    %v110 = vrsqrt.pop %v108
    %v111 = vmul.f32 %v108, %v110
    %vm112 = vcmp.eq.f32.partialorder %v108, inf
    %v113 = vsel %vm112, %v108, %v111
    %vm114 = vcmp.eq.f32.partialorder %v108, 0.0
    %v115 = vand.u32 %v108, 2147483648
    %v116 = vsel %vm114, %v115, %v113
    %v117 = vrsqrt.pop %v109
    %v118 = vmul.f32 %v109, %v117
    %vm119 = vcmp.eq.f32.partialorder %v109, inf
    %v120 = vsel %vm119, %v109, %v118
    %vm121 = vcmp.eq.f32.partialorder %v109, 0.0
    %v122 = vand.u32 %v109, 2147483648
    %v123 = vsel %vm121, %v122, %v120
    %v124 = vadd.f32 %v116, 1e-06
    %v125 = vadd.f32 %v123, 1e-06
    %v126 = vrcp.pop %v124
    %v127 = vrcp.pop %v125
    %v129 = vlaneseq
    %v130 = vshrl.u32 %v129, 7
    %v131 = vsub.s32 0, %v130
    %v132 = vrot.slane %v85, %v131
    %v134 = vmul.f32 %v132, %v97
    %v135 = vmul.f32 %v132, %v98
    %v136 = vmul.f32 %v134, %v126
    %v137 = vmul.f32 %v135, %v127
    %v139 = vlaneseq
    %v140 = vshrl.u32 %v139, 7
    %v141 = vsub.s32 0, %v140
    %v142 = vrot.slane %v86, %v141
    %v144 = vadd.f32 %v136, %v142
    %v145 = vadd.f32 %v137, %v142
    %v146 = vld [vmem:[#allocation5] sm:$0xff]
    %v147 = vld [vmem:[#allocation5 + $0x8] sm:$0xff]
    %v148 = vld [vmem:[#allocation5 + $0x10] sm:$0xff]
    %v149 = vld [vmem:[#allocation5 + $0x18] sm:$0xff]
    %v151 = vsel %vm87, %v144, 0
    %v154 = vsel %vm87, %v145, 0
    %156 = vmatprep.subr.mxu0 0.0
    %157 = vmatpush1.msra.mxu0 %v146
    %158 = vmatprep.subr.mxu0 0.0
    %159 = vmatpush1.msra.mxu0 %v147
    %160 = vmatprep.subr.mxu0 0.0
    %161 = vmatpush1.msra.mxu0 %v148
    %162 = vmatprep.subr.mxu0 0.0
    %163 = vmatpush1.msra.mxu0 %v149
    %164 = vmatprep.subr.mxu0 0.0
    %165 = vmatpush1.msra.mxu0 0.0
    %166 = vmatprep.subr.mxu0 0.0
    %167 = vmatpush1.msra.mxu0 0.0
    %168 = vmatprep.subr.mxu0 0.0
    %169 = vmatpush1.msra.mxu0 0.0
    %170 = vmatprep.subr.mxu0 0.0
    %171 = vmatpush1.msra.mxu0 0.0
    %172 = vmatprep.subr.mxu0 0.0
    %173 = vmatpush1.msra.mxu0 0.0
    %174 = vmatprep.subr.mxu0 0.0
    %175 = vmatpush1.msra.mxu0 0.0
    %176 = vmatprep.subr.mxu0 0.0
    %177 = vmatpush1.msra.mxu0 0.0
    %178 = vmatprep.subr.mxu0 0.0
    %179 = vmatpush1.msra.mxu0 0.0
    %180 = vmatprep.subr.mxu0 0.0
    %181 = vmatpush1.msra.mxu0 0.0
    %182 = vmatprep.subr.mxu0 0.0
    %183 = vmatpush1.msra.mxu0 0.0
    %184 = vmatprep.subr.mxu0 0.0
    %185 = vmatpush1.msra.mxu0 0.0
    %186 = vmatprep.subr.mxu0 0.0
    %187 = vmatpush1.msra.mxu0 0.0
    %188 = vmatprep.subr.mxu0 0.0
    %189 = vmatpush1.msra.mxu0 0.0
    %190 = vmatprep.subr.mxu0 0.0
    %191 = vmatpush1.msra.mxu0 0.0
    %192 = vmatprep.subr.mxu0 0.0
    %193 = vmatpush1.msra.mxu0 0.0
    %194 = vmatprep.subr.mxu0 0.0
    %195 = vmatpush1.msra.mxu0 0.0
    %196 = vmatprep.subr.mxu0 0.0
    %197 = vmatpush1.msra.mxu0 0.0
    %198 = vmatprep.subr.mxu0 0.0
    %199 = vmatpush1.msra.mxu0 0.0
    %200 = vmatprep.subr.mxu0 0.0
    %201 = vmatpush1.msra.mxu0 0.0
    %202 = vmatprep.subr.mxu0 0.0
    %203 = vmatpush1.msra.mxu0 0.0
    %204 = vmatprep.subr.mxu0 0.0
    %205 = vmatpush1.msra.mxu0 0.0
    %206 = vmatprep.subr.mxu0 0.0
    %207 = vmatpush1.msra.mxu0 0.0
    %208 = vmatprep.subr.mxu0 0.0
    %209 = vmatpush1.msra.mxu0 0.0
    %210 = vmatprep.subr.mxu0 0.0
    %211 = vmatpush1.msra.mxu0 0.0
    %212 = vmatprep.subr.mxu0 0.0
    %213 = vmatpush1.msra.mxu0 0.0
    %214 = vmatprep.subr.mxu0 0.0
    %215 = vmatpush1.msra.mxu0 0.0
    %216 = vmatprep.subr.mxu0 0.0
    %217 = vmatpush1.msra.mxu0 0.0
    %218 = vmatprep.subr.mxu0 0.0
    %219 = vmatpush1.msra.mxu0 0.0
    %220 = vmatprep.mubr.f32.mxu0 0.0
    %221 = vmatmul.mubr.f32.gmra.mrb[0].mxu0 %v151
    %v222 = vpop.f32.mrb[0].mxu0
    %v223 = vadd.f32 0.0, %v222
    %v224 = vpop.f32.mrb[0].mxu0
    %225 = vmatprep.mubr.f32.mxu0 0.0
    %226 = vmatmul.mubr.f32.gmra.mrb[0].mxu0 %v154
    %v227 = vpop.f32.mrb[0].mxu0
    %v228 = vadd.f32 0.0, %v227
    %v229 = vpop.f32.mrb[0].mxu0
    %230 = vdwg.mxu0
    %231 = vst.msk [vmem:[#allocation10] sm:$0xff] %vm87, %v223
    %232 = vst.msk [vmem:[#allocation10 + $0x8] sm:$0xff] %vm87, %v228
    %v233 = vld [vmem:[#allocation7] sm:$0xff]
    %v234 = vld [vmem:[#allocation7 + $0x8] sm:$0xff]
    %v235 = vld [vmem:[#allocation7 + $0x10] sm:$0xff]
    %v236 = vld [vmem:[#allocation7 + $0x18] sm:$0xff]
    %237 = vmatprep.subr.mxu0 0.0
    %238 = vmatpush1.msra.mxu0 %v233
    %239 = vmatprep.subr.mxu0 0.0
    %240 = vmatpush1.msra.mxu0 %v234
    %241 = vmatprep.subr.mxu0 0.0
    %242 = vmatpush1.msra.mxu0 %v235
    %243 = vmatprep.subr.mxu0 0.0
    %244 = vmatpush1.msra.mxu0 %v236
    %245 = vmatprep.subr.mxu0 0.0
    %246 = vmatpush1.msra.mxu0 0.0
    %247 = vmatprep.subr.mxu0 0.0
    %248 = vmatpush1.msra.mxu0 0.0
    %249 = vmatprep.subr.mxu0 0.0
    %250 = vmatpush1.msra.mxu0 0.0
    %251 = vmatprep.subr.mxu0 0.0
    %252 = vmatpush1.msra.mxu0 0.0
    %253 = vmatprep.subr.mxu0 0.0
    %254 = vmatpush1.msra.mxu0 0.0
    %255 = vmatprep.subr.mxu0 0.0
    %256 = vmatpush1.msra.mxu0 0.0
    %257 = vmatprep.subr.mxu0 0.0
    %258 = vmatpush1.msra.mxu0 0.0
    %259 = vmatprep.subr.mxu0 0.0
    %260 = vmatpush1.msra.mxu0 0.0
    %261 = vmatprep.subr.mxu0 0.0
    %262 = vmatpush1.msra.mxu0 0.0
    %263 = vmatprep.subr.mxu0 0.0
    %264 = vmatpush1.msra.mxu0 0.0
    %265 = vmatprep.subr.mxu0 0.0
    %266 = vmatpush1.msra.mxu0 0.0
    %267 = vmatprep.subr.mxu0 0.0
    %268 = vmatpush1.msra.mxu0 0.0
    %269 = vmatprep.subr.mxu0 0.0
    %270 = vmatpush1.msra.mxu0 0.0
    %271 = vmatprep.subr.mxu0 0.0
    %272 = vmatpush1.msra.mxu0 0.0
    %273 = vmatprep.subr.mxu0 0.0
    %274 = vmatpush1.msra.mxu0 0.0
    %275 = vmatprep.subr.mxu0 0.0
    %276 = vmatpush1.msra.mxu0 0.0
    %277 = vmatprep.subr.mxu0 0.0
    %278 = vmatpush1.msra.mxu0 0.0
    %279 = vmatprep.subr.mxu0 0.0
    %280 = vmatpush1.msra.mxu0 0.0
    %281 = vmatprep.subr.mxu0 0.0
    %282 = vmatpush1.msra.mxu0 0.0
    %283 = vmatprep.subr.mxu0 0.0
    %284 = vmatpush1.msra.mxu0 0.0
    %285 = vmatprep.subr.mxu0 0.0
    %286 = vmatpush1.msra.mxu0 0.0
    %287 = vmatprep.subr.mxu0 0.0
    %288 = vmatpush1.msra.mxu0 0.0
    %289 = vmatprep.subr.mxu0 0.0
    %290 = vmatpush1.msra.mxu0 0.0
    %291 = vmatprep.subr.mxu0 0.0
    %292 = vmatpush1.msra.mxu0 0.0
    %293 = vmatprep.subr.mxu0 0.0
    %294 = vmatpush1.msra.mxu0 0.0
    %295 = vmatprep.subr.mxu0 0.0
    %296 = vmatpush1.msra.mxu0 0.0
    %297 = vmatprep.subr.mxu0 0.0
    %298 = vmatpush1.msra.mxu0 0.0
    %299 = vmatprep.subr.mxu0 0.0
    %300 = vmatpush1.msra.mxu0 0.0
    %301 = vmatprep.mubr.f32.mxu0 0.0
    %302 = vmatmul.mubr.f32.gmra.mrb[0].mxu0 %v151
    %v303 = vpop.f32.mrb[0].mxu0
    %v304 = vadd.f32 0.0, %v303
    %v305 = vpop.f32.mrb[0].mxu0
    %306 = vmatprep.mubr.f32.mxu0 0.0
    %307 = vmatmul.mubr.f32.gmra.mrb[0].mxu0 %v154
    %v308 = vpop.f32.mrb[0].mxu0
    %v309 = vadd.f32 0.0, %v308
    %v310 = vpop.f32.mrb[0].mxu0
    %311 = vdwg.mxu0
    %312 = vst.msk [vmem:[#allocation11] sm:$0xff] %vm87, %v304
    %313 = vst.msk [vmem:[#allocation11 + $0x8] sm:$0xff] %vm87, %v309
    %v314 = vld [vmem:[#allocation8] sm:$0xff]
    %v315 = vld [vmem:[#allocation8 + $0x8] sm:$0xff]
    %v316 = vld [vmem:[#allocation8 + $0x10] sm:$0xff]
    %v317 = vld [vmem:[#allocation8 + $0x18] sm:$0xff]
    %318 = vmatprep.subr.mxu0 0.0
    %319 = vmatpush1.msra.mxu0 %v314
    %320 = vmatprep.subr.mxu0 0.0
    %321 = vmatpush1.msra.mxu0 %v315
    %322 = vmatprep.subr.mxu0 0.0
    %323 = vmatpush1.msra.mxu0 %v316
    %324 = vmatprep.subr.mxu0 0.0
    %325 = vmatpush1.msra.mxu0 %v317
    %326 = vmatprep.subr.mxu0 0.0
    %327 = vmatpush1.msra.mxu0 0.0
    %328 = vmatprep.subr.mxu0 0.0
    %329 = vmatpush1.msra.mxu0 0.0
    %330 = vmatprep.subr.mxu0 0.0
    %331 = vmatpush1.msra.mxu0 0.0
    %332 = vmatprep.subr.mxu0 0.0
    %333 = vmatpush1.msra.mxu0 0.0
    %334 = vmatprep.subr.mxu0 0.0
    %335 = vmatpush1.msra.mxu0 0.0
    %336 = vmatprep.subr.mxu0 0.0
    %337 = vmatpush1.msra.mxu0 0.0
    %338 = vmatprep.subr.mxu0 0.0
    %339 = vmatpush1.msra.mxu0 0.0
    %340 = vmatprep.subr.mxu0 0.0
    %341 = vmatpush1.msra.mxu0 0.0
    %342 = vmatprep.subr.mxu0 0.0
    %343 = vmatpush1.msra.mxu0 0.0
    %344 = vmatprep.subr.mxu0 0.0
    %345 = vmatpush1.msra.mxu0 0.0
    %346 = vmatprep.subr.mxu0 0.0
    %347 = vmatpush1.msra.mxu0 0.0
    %348 = vmatprep.subr.mxu0 0.0
    %349 = vmatpush1.msra.mxu0 0.0
    %350 = vmatprep.subr.mxu0 0.0
    %351 = vmatpush1.msra.mxu0 0.0
    %352 = vmatprep.subr.mxu0 0.0
    %353 = vmatpush1.msra.mxu0 0.0
    %354 = vmatprep.subr.mxu0 0.0
    %355 = vmatpush1.msra.mxu0 0.0
    %356 = vmatprep.subr.mxu0 0.0
    %357 = vmatpush1.msra.mxu0 0.0
    %358 = vmatprep.subr.mxu0 0.0
    %359 = vmatpush1.msra.mxu0 0.0
    %360 = vmatprep.subr.mxu0 0.0
    %361 = vmatpush1.msra.mxu0 0.0
    %362 = vmatprep.subr.mxu0 0.0
    %363 = vmatpush1.msra.mxu0 0.0
    %364 = vmatprep.subr.mxu0 0.0
    %365 = vmatpush1.msra.mxu0 0.0
    %366 = vmatprep.subr.mxu0 0.0
    %367 = vmatpush1.msra.mxu0 0.0
    %368 = vmatprep.subr.mxu0 0.0
    %369 = vmatpush1.msra.mxu0 0.0
    %370 = vmatprep.subr.mxu0 0.0
    %371 = vmatpush1.msra.mxu0 0.0
    %372 = vmatprep.subr.mxu0 0.0
    %373 = vmatpush1.msra.mxu0 0.0
    %374 = vmatprep.subr.mxu0 0.0
    %375 = vmatpush1.msra.mxu0 0.0
    %376 = vmatprep.subr.mxu0 0.0
    %377 = vmatpush1.msra.mxu0 0.0
    %378 = vmatprep.subr.mxu0 0.0
    %379 = vmatpush1.msra.mxu0 0.0
    %380 = vmatprep.subr.mxu0 0.0
    %381 = vmatpush1.msra.mxu0 0.0
    %382 = vmatprep.mubr.f32.mxu0 0.0
    %383 = vmatmul.mubr.f32.gmra.mrb[0].mxu0 %v151
    %v384 = vpop.f32.mrb[0].mxu0
    %v385 = vadd.f32 0.0, %v384
    %v386 = vpop.f32.mrb[0].mxu0
    %387 = vmatprep.mubr.f32.mxu0 0.0
    %388 = vmatmul.mubr.f32.gmra.mrb[0].mxu0 %v154
    %v389 = vpop.f32.mrb[0].mxu0
    %v390 = vadd.f32 0.0, %v389
    %v391 = vpop.f32.mrb[0].mxu0
    %392 = vdwg.mxu0
    %393 = vst.msk [vmem:[#allocation13] sm:$0xff] %vm87, %v385
    %394 = vst.msk [vmem:[#allocation13 + $0x8] sm:$0xff] %vm87, %v390
    // Predicated region
    $region42: #{tpu_custom_call.1} parent=1 // pred_check
      _
    $region43: #{tpu_custom_call.1} parent=1 // pred_check_branch
      %396 = sbr.rel (0) target = $region45
    $region44: #{tpu_custom_call.1} parent=1 // pred_region
      %s398 = ssub.s32 256, 256
      %399 = vsyncadd [#allocation4], %s398
      %s400 = sshll.u32 [#allocation10], 4
      %s401 = int_to_ptr.vmem [resolvable:$true] %s400
      %406 = dma.vmem_to_hbm [thread:$0]  %s401, 256, %s6, [#allocation4], 128, 128, 8
    $region45: #{tpu_custom_call.1} parent=1 // pred_fallthru
      _
    // Predicated region
    $region46: #{tpu_custom_call.1} parent=1 // pred_check
      _
    $region47: #{tpu_custom_call.1} parent=1 // pred_check_branch
      %408 = sbr.rel (0) target = $region49
    $region48: #{tpu_custom_call.1} parent=1 // pred_region
      %s410 = ssub.s32 256, 256
      %411 = vsyncadd [#allocation12], %s410
      %s412 = sshll.u32 [#allocation11], 4
      %s413 = int_to_ptr.vmem [resolvable:$true] %s412
      %418 = dma.vmem_to_hbm [thread:$0]  %s413, 256, %s7, [#allocation12], 128, 128, 8
    $region49: #{tpu_custom_call.1} parent=1 // pred_fallthru
      _
    // Predicated region
    $region50: #{tpu_custom_call.1} parent=1 // pred_check
      _
    $region51: #{tpu_custom_call.1} parent=1 // pred_check_branch
      %420 = sbr.rel (0) target = $region53
    $region52: #{tpu_custom_call.1} parent=1 // pred_region
      %s422 = ssub.s32 256, 256
      %423 = vsyncadd [#allocation12], %s422
      %s424 = sshll.u32 [#allocation13], 4
      %s425 = int_to_ptr.vmem [resolvable:$true] %s424
      %430 = dma.vmem_to_hbm [thread:$0]  %s425, 256, %s8, [#allocation12], 128, 128, 8
    $region53: #{tpu_custom_call.1} parent=1 // pred_fallthru
      _
    // Predicated region
    $region54: #{tpu_custom_call.1} parent=1 // pred_check
      _
    $region55: #{tpu_custom_call.1} parent=1 // pred_check_branch
      %432 = sbr.rel (0) target = $region57
    $region56: #{tpu_custom_call.1} parent=1 // pred_region
      %433 = dma.done [#allocation4], 256
    $region57: #{tpu_custom_call.1} parent=1 // pred_fallthru
      _
    // Predicated region
    $region58: #{tpu_custom_call.1} parent=1 // pred_check
      _
    $region59: #{tpu_custom_call.1} parent=1 // pred_check_branch
      %435 = sbr.rel (0) target = $region61
    $region60: #{tpu_custom_call.1} parent=1 // pred_region
      %436 = dma.done [#allocation12], 256
    $region61: #{tpu_custom_call.1} parent=1 // pred_fallthru
      _
    // Predicated region
    $region62: #{tpu_custom_call.1} parent=1 // pred_check
      _
    $region63: #{tpu_custom_call.1} parent=1 // pred_check_branch
      %438 = sbr.rel (0) target = $region65
    $region64: #{tpu_custom_call.1} parent=1 // pred_region
      %439 = dma.done [#allocation12], 256
    $region65: #{tpu_custom_call.1} parent=1 // pred_fallthru
      _
    %440 = vsyncpa [#allocation3], 1
    %441 = vsyncpa [#allocation6], 1
    %442 = vsyncpa [#allocation9], 1
    %443 = vsyncpa [#allocation4], 1
    %444 = vsyncpa [#allocation12], 1

</llo_original>
